<compile_context>
chip_gen: v6e
topology: v6e:2x2x1
jax: 0.10.0
libtpu: 0.0.40
codegen_flags: <defaults>
</compile_context>

<pallas_src>
import functools

import jax
import jax.numpy as jnp
from jax import lax
from jax.experimental import pallas as pl
from jax.experimental.pallas import tpu as pltpu

# ----- model hyper-parameters (small, consistent with the module) -----
N = 8            # number of graph nodes
IN_DIM = 16
HID_DIM = 32     # encoder output size (GCN "out_dim")
OUT_DIM = 16     # projector hidden size
NUM_LAYERS = 2
TEMP = 0.5
MAX_KHOP = 2
ALPHA = 0.8
B = 4            # graphs / augmented views processed per kernel launch
# ranking_type == 'pair'

# ----- packed-slab layout -----------------------------------------------------
# Per-graph data slab: (N, DATA_LANES) f32, lane-dense (last dim = 128).
A_COL = 0                       # normalized adjacency, N columns
K_COL = A_COL + N               # MAX_KHOP consecutive N-wide khop masks
X_COL = K_COL + MAX_KHOP * N    # node features, IN_DIM columns
DATA_LANES = 128
assert X_COL + IN_DIM <= DATA_LANES


def _align8(r):
    return (r + 7) & ~7


# Weight slab: (W_ROWS, 128) f32; every block's row start is 8-aligned.
GW0_R = 0                                   # (IN_DIM, 2*HID_DIM)
GB0_R = _align8(GW0_R + IN_DIM)             # (1, 2*HID_DIM)
GW1_R = _align8(GB0_R + 1)                  # (2*HID_DIM, HID_DIM)
GB1_R = _align8(GW1_R + 2 * HID_DIM)        # (1, HID_DIM)
PW1_R = _align8(GB1_R + 1)                  # (HID_DIM, OUT_DIM)
PB1_R = _align8(PW1_R + HID_DIM)            # (1, OUT_DIM)
PW2_R = _align8(PB1_R + 1)                  # (OUT_DIM, HID_DIM)
PB2_R = _align8(PW2_R + OUT_DIM)            # (1, HID_DIM)
W_ROWS = _align8(PB2_R + 1)                 # = 160
W_LANES = 128


# ---------------------------------------------------------------------------
# Fused Pallas kernel: encoder + projector + GRACE 'pair' loss (one graph/step)
# ---------------------------------------------------------------------------
def grace_fused_kernel(w_ref, d_ref, loss_ref, *, temp, alpha, max_khop):
    # ---- unpack per-graph data slab (one lane-dense VMEM block) ----
    a = d_ref[:, A_COL:A_COL + N]            # normalized adjacency (N, N)
    x = d_ref[:, X_COL:X_COL + IN_DIM]       # node features (N, IN_DIM)

    # ---- unpack weight slab (VMEM-resident across the whole batch grid) ----
    gw0 = w_ref[GW0_R:GW0_R + IN_DIM,      0:2 * HID_DIM]
    gb0 = w_ref[GB0_R:GB0_R + 1,           0:2 * HID_DIM]
    gw1 = w_ref[GW1_R:GW1_R + 2 * HID_DIM, 0:HID_DIM]
    gb1 = w_ref[GB1_R:GB1_R + 1,           0:HID_DIM]
    pw1 = w_ref[PW1_R:PW1_R + HID_DIM,     0:OUT_DIM]
    pb1 = w_ref[PB1_R:PB1_R + 1,           0:OUT_DIM]
    pw2 = w_ref[PW2_R:PW2_R + OUT_DIM,     0:HID_DIM]
    pb2 = w_ref[PB2_R:PB2_R + 1,           0:HID_DIM]

    # ---- GCN layer 1: relu(A @ (X @ W0) + b0) -- wider matmul feeds MXU first ----
    h = jnp.dot(x, gw0, preferred_element_type=jnp.float32)
    h = jnp.dot(a, h, preferred_element_type=jnp.float32) + gb0
    h = jnp.maximum(h, 0.0)

    # ---- GCN layer 2: relu(A @ (H @ W1) + b1) ----
    h = jnp.dot(h, gw1, preferred_element_type=jnp.float32)
    h = jnp.dot(a, h, preferred_element_type=jnp.float32) + gb1
    h = jnp.maximum(h, 0.0)

    # ---- MLP projector: fc2(elu(fc1(h))) ----
    t = jnp.dot(h, pw1, preferred_element_type=jnp.float32) + pb1
    t = jnp.where(t > 0.0, t, jnp.exp(t) - 1.0)           # ELU(alpha=1)
    z = jnp.dot(t, pw2, preferred_element_type=jnp.float32) + pb2

    # ---- cosine similarity via rsqrt (EUP) + transpose-free contraction ----
    sumsq = jnp.sum(z * z, axis=-1, keepdims=True)
    inv_nrm = lax.rsqrt(jnp.maximum(sumsq, 1e-24))        # == 1/max(||z||, 1e-12)
    zn = z * inv_nrm
    s = lax.dot_general(zn, zn, (((1,), (1,)), ((), ())),  # contract minor dim of both
                        preferred_element_type=jnp.float32)
    z_sim = jnp.exp(s * jnp.float32(1.0 / temp))          # f(sim(z, z))

    # khop_sim[i] = (z_sim * khops[i]).sum(dim=0) -> shape (1, N)
    khop_sim = []
    for i in range(max_khop):
        k_mask = d_ref[:, K_COL + i * N:K_COL + (i + 1) * N]
        khop_sim.append(jnp.sum(z_sim * k_mask, axis=0, keepdims=True))

    # ranking_type == 'pair'; boolean indexing -> masked reductions (same numerics).
    loss_sum = jnp.float32(0.0)
    for i in range(max_khop):
        for j in range(i + 1, max_khop):
            ki, kj = khop_sim[i], khop_sim[j]
            idx = jnp.logical_and(ki != 0.0, kj != 0.0)
            denom = jnp.where(idx, ki + kj, 1.0)
            # Exact reciprocal (EUP seed + Newton refine). approx=True could flip
            # the `ratio < alpha` mask for ratios near alpha, so keep exact.
            ratio = ki * pl.reciprocal(denom, approx=False)
            ratio = jnp.where(idx, ratio, 1.0)
            mask = jnp.logical_and(idx, ratio < alpha)
            safe = jnp.where(mask, ratio, 1.0)            # log(1) = 0 where masked
            loss_sum += -jnp.sum(jnp.log(safe))

    # Lane-dense (unmasked) store of the per-graph scalar loss.
    loss_ref[...] = jnp.full((1, 128), loss_sum, dtype=jnp.float32)


def grace_forward_batched(w_slab, data_slab):
    b = data_slab.shape[0]
    kernel = functools.partial(
        grace_fused_kernel, temp=TEMP, alpha=ALPHA, max_khop=MAX_KHOP)
    out = pl.pallas_call(
        kernel,
        out_shape=jax.ShapeDtypeStruct((b, 1, 128), jnp.float32),
        grid_spec=pltpu.PrefetchScalarGridSpec(
            num_scalar_prefetch=0,
            grid=(b,),
            in_specs=[
                # weights: constant block index -> DMA'd once, resident for all steps
                pl.BlockSpec((W_ROWS, W_LANES), lambda i: (0, 0)),
                # per-graph packed data slab
                pl.BlockSpec((None, N, DATA_LANES), lambda i: (i, 0, 0)),
            ],
            out_specs=pl.BlockSpec((None, 1, 128), lambda i: (i, 0, 0)),
        ),
        compiler_params=pltpu.CompilerParams(
            dimension_semantics=("parallel",)),   # v7x: batch split across 2 TCs
    )(w_slab, data_slab)
    return out[:, 0, 0]


# ---------------------------------------------------------------------------
# Packing helpers (trace-time, plain JAX)
# ---------------------------------------------------------------------------
def pack_weights(params):
    (gw0, gb0), (gw1, gb1) = params["gcn"]
    w = jnp.zeros((W_ROWS, W_LANES), jnp.float32)
    w = w.at[GW0_R:GW0_R + IN_DIM,      0:2 * HID_DIM].set(gw0)
    w = w.at[GB0_R:GB0_R + 1,           0:2 * HID_DIM].set(gb0)
    w = w.at[GW1_R:GW1_R + 2 * HID_DIM, 0:HID_DIM].set(gw1)
    w = w.at[GB1_R:GB1_R + 1,           0:HID_DIM].set(gb1)
    w = w.at[PW1_R:PW1_R + HID_DIM,     0:OUT_DIM].set(params["w1"])
    w = w.at[PB1_R:PB1_R + 1,           0:OUT_DIM].set(params["b1"])
    w = w.at[PW2_R:PW2_R + OUT_DIM,     0:HID_DIM].set(params["w2"])
    w = w.at[PB2_R:PB2_R + 1,           0:HID_DIM].set(params["b2"])
    return w


def pack_graph(a_norm, khops, feat):
    d = jnp.zeros((N, DATA_LANES), jnp.float32)
    d = d.at[:, A_COL:A_COL + N].set(a_norm)
    for i in range(MAX_KHOP):
        d = d.at[:, K_COL + i * N:K_COL + (i + 1) * N].set(khops[i])
    d = d.at[:, X_COL:X_COL + IN_DIM].set(feat)
    return d


# ---------------------------------------------------------------------------
# Graph / khop / parameter setup (plain-JAX glue, deterministic)
# ---------------------------------------------------------------------------
def build_graph(n, variant):
    # ring + two variant-dependent chords, symmetric, no self loops
    a = jnp.zeros((n, n), jnp.float32)
    idx = jnp.arange(n)
    a = a.at[idx, (idx + 1) % n].set(1.0)
    a = a.at[(idx + 1) % n, idx].set(1.0)
    c0 = variant % n
    c1 = (c0 + n // 2) % n
    a = a.at[c0, c1].set(1.0).at[c1, c0].set(1.0)
    c2 = (variant + 1) % n
    c3 = (c2 + 3) % n
    a = a.at[c2, c3].set(1.0).at[c3, c2].set(1.0)
    a = a * (1.0 - jnp.eye(n, dtype=jnp.float32))
    return a


def normalize_adj(a):
    # DGL GraphConv norm='both': D^-1/2 A D^-1/2
    deg = jnp.sum(a, axis=1)
    dis = jnp.where(deg > 0, 1.0 / jnp.sqrt(deg), 0.0)
    return a * dis[:, None] * dis[None, :]


def compute_khops(a, max_khop):
    # Reproduces Grace.get_khop_neighbors, including the in-place
    # fill_diagonal_ side effect on `adj` before the matmul loop.
    n = a.shape[0]
    eye = jnp.eye(n, dtype=a.dtype)
    adj1 = a * (1.0 - eye) + eye                 # adj.fill_diagonal_(1)
    kadj = [adj1]
    khop0 = adj1 * (1.0 - eye)                   # adj.fill_diagonal_(0) (mutates adj)
    khops = [khop0]
    adj_mut = khop0
    for i in range(1, max_khop):
        k = kadj[i - 1] @ adj_mut
        k = (k != 0).astype(a.dtype)             # kadj[i][kadj[i] != 0] = 1
        khops.append(k - kadj[i - 1])
        kadj.append(k)
    return jnp.stack(khops, axis=0)


def init_params(key):
    ks = jax.random.split(key, 8)
    gcn_dims = [(IN_DIM, 2 * HID_DIM), (2 * HID_DIM, HID_DIM)]   # num_layers = 2
    gcn = []
    for i, (di, do) in enumerate(gcn_dims):
        w = jax.random.normal(ks[i], (di, do), jnp.float32) / jnp.sqrt(jnp.float32(di))
        b = jnp.zeros((1, do), jnp.float32)
        gcn.append((w, b))
    w1 = jax.random.normal(ks[4], (HID_DIM, OUT_DIM), jnp.float32) / jnp.sqrt(jnp.float32(HID_DIM))
    b1 = jax.random.normal(ks[5], (1, OUT_DIM), jnp.float32) * 0.01
    w2 = jax.random.normal(ks[6], (OUT_DIM, HID_DIM), jnp.float32) / jnp.sqrt(jnp.float32(OUT_DIM))
    b2 = jax.random.normal(ks[7], (1, HID_DIM), jnp.float32) * 0.01
    return {"gcn": gcn, "w1": w1, "b1": b1, "w2": w2, "b2": b2}


# ---------------------------------------------------------------------------
# Pure-JAX reference (per-graph, for correctness check)
# ---------------------------------------------------------------------------
def reference_forward(a_norm, khops, feat, params):
    h = feat
    for w, b in params["gcn"]:
        h = jnp.maximum(a_norm @ h @ w + b, 0.0)
    t = h @ params["w1"] + params["b1"]
    t = jnp.where(t > 0.0, t, jnp.exp(t) - 1.0)
    z = t @ params["w2"] + params["b2"]
    zn = z / jnp.maximum(jnp.sqrt(jnp.sum(z * z, axis=1, keepdims=True)), 1e-12)
    zsim = jnp.exp(zn @ zn.T / TEMP)
    ks = [jnp.sum(zsim * khops[i], axis=0) for i in range(MAX_KHOP)]
    loss = 0.0
    for i in range(MAX_KHOP):
        for j in range(i + 1, MAX_KHOP):
            idx = (ks[i] != 0) & (ks[j] != 0)
            ratio = jnp.where(idx, ks[i] / jnp.where(idx, ks[i] + ks[j], 1.0), 1.0)
            mask = idx & (ratio < ALPHA)
            loss += -jnp.sum(jnp.where(mask, jnp.log(jnp.where(mask, ratio, 1.0)), 0.0))
    return loss


if __name__ == "__main__":
    key = jax.random.PRNGKey(0)
    k_feat, k_params = jax.random.split(key)

    params = init_params(k_params)
    w_slab = pack_weights(params)

    feat_keys = jax.random.split(k_feat, B)
    data_slabs, refs = [], []
    for b in range(B):
        a = build_graph(N, b)
        a_norm = normalize_adj(a)
        khops = compute_khops(a, MAX_KHOP)
        feat = jax.random.normal(feat_keys[b], (N, IN_DIM), jnp.float32)
        data_slabs.append(pack_graph(a_norm, khops, feat))
        refs.append(reference_forward(a_norm, khops, feat, params))
    data_slab = jnp.stack(data_slabs, axis=0)   # (B, N, 128)
    ref = jnp.stack(refs)                       # (B,)

    loss = grace_forward_batched(w_slab, data_slab)
    loss = jax.block_until_ready(loss)

    assert jnp.allclose(loss, ref, rtol=1e-4, atol=1e-4), (loss, ref)

    print("KERNEL_OK")
</pallas_src>

<mosaic_0001>
module attributes {stable_mosaic.version = 11 : i64} {
  func.func @grace_fused_kernel(%arg0: i32, %arg1: memref<160x128xf32, #tpu.memory_space<vmem>>, %arg2: memref<1x8x128xf32, #tpu.memory_space<vmem>>, %arg3: memref<1x1x128xf32, #tpu.memory_space<vmem>>) attributes {dimension_semantics = [#tpu.dimension_semantics<parallel>], iteration_bounds = array<i64: 4>, scalar_prefetch = 0 : i64, scratch_operands = 0 : i64, tpu.core_type = #tpu.core_type<tc>, window_params = [{pipeline_mode = #tpu.pipeline_mode<synchronous>, transform_indices = @transform_0, window_bounds = array<i64: 160, 128>}, {transform_indices = @transform_1, window_bounds = array<i64: 1, 8, 128>}, {transform_indices = @transform_2, window_bounds = array<i64: 1, 1, 128>}]} {
    %c0 = arith.constant 0 : index
    %c0_0 = arith.constant 0 : index
    %c0_1 = arith.constant 0 : index
    %0 = vector.load %arg2[%c0, %c0_0, %c0_1] : memref<1x8x128xf32, #tpu.memory_space<vmem>>, vector<1x8x8xf32>
    %1 = vector.shape_cast %0 : vector<1x8x8xf32> to vector<8x8xf32>
    %c0_2 = arith.constant 0 : index
    %c0_3 = arith.constant 0 : index
    %c24 = arith.constant 24 : index
    %2 = vector.load %arg2[%c0_2, %c0_3, %c24] : memref<1x8x128xf32, #tpu.memory_space<vmem>>, vector<1x8x16xf32>
    %3 = vector.shape_cast %2 : vector<1x8x16xf32> to vector<8x16xf32>
    %c0_4 = arith.constant 0 : index
    %c0_5 = arith.constant 0 : index
    %4 = vector.load %arg1[%c0_4, %c0_5] : memref<160x128xf32, #tpu.memory_space<vmem>>, vector<16x64xf32>
    %c16 = arith.constant 16 : index
    %c0_6 = arith.constant 0 : index
    %5 = vector.load %arg1[%c16, %c0_6] : memref<160x128xf32, #tpu.memory_space<vmem>>, vector<1x64xf32>
    %c24_7 = arith.constant 24 : index
    %c0_8 = arith.constant 0 : index
    %6 = vector.load %arg1[%c24_7, %c0_8] : memref<160x128xf32, #tpu.memory_space<vmem>>, vector<64x32xf32>
    %c88 = arith.constant 88 : index
    %c0_9 = arith.constant 0 : index
    %7 = vector.load %arg1[%c88, %c0_9] : memref<160x128xf32, #tpu.memory_space<vmem>>, vector<1x32xf32>
    %c96 = arith.constant 96 : index
    %c0_10 = arith.constant 0 : index
    %8 = vector.load %arg1[%c96, %c0_10] : memref<160x128xf32, #tpu.memory_space<vmem>>, vector<32x16xf32>
    %c128 = arith.constant 128 : index
    %c0_11 = arith.constant 0 : index
    %9 = vector.load %arg1[%c128, %c0_11] : memref<160x128xf32, #tpu.memory_space<vmem>>, vector<1x16xf32>
    %c136 = arith.constant 136 : index
    %c0_12 = arith.constant 0 : index
    %10 = vector.load %arg1[%c136, %c0_12] : memref<160x128xf32, #tpu.memory_space<vmem>>, vector<16x32xf32>
    %c152 = arith.constant 152 : index
    %c0_13 = arith.constant 0 : index
    %11 = vector.load %arg1[%c152, %c0_13] : memref<160x128xf32, #tpu.memory_space<vmem>>, vector<1x32xf32>
    %cst = arith.constant dense<0.000000e+00> : vector<8x64xf32>
    %12 = tpu.matmul %3, %4, %cst {dimension_numbers = #tpu.dot_dimension_numbers<[1], [0], [0], [1], [0, 0, 1, 1], [], []>} : vector<8x16xf32>, vector<16x64xf32>, vector<8x64xf32> -> vector<8x64xf32>
    %cst_14 = arith.constant dense<0.000000e+00> : vector<8x64xf32>
    %13 = tpu.matmul %1, %12, %cst_14 {dimension_numbers = #tpu.dot_dimension_numbers<[1], [0], [0], [1], [0, 0, 1, 1], [], []>} : vector<8x8xf32>, vector<8x64xf32>, vector<8x64xf32> -> vector<8x64xf32>
    %14 = vector.broadcast %5 : vector<1x64xf32> to vector<8x64xf32>
    %15 = arith.addf %13, %14 : vector<8x64xf32>
    %cst_15 = arith.constant 0.000000e+00 : f32
    %16 = vector.broadcast %cst_15 : f32 to vector<8x64xf32>
    %17 = arith.maximumf %15, %16 : vector<8x64xf32>
    %cst_16 = arith.constant dense<0.000000e+00> : vector<8x32xf32>
    %18 = tpu.matmul %17, %6, %cst_16 {dimension_numbers = #tpu.dot_dimension_numbers<[1], [0], [0], [1], [0, 0, 1, 1], [], []>} : vector<8x64xf32>, vector<64x32xf32>, vector<8x32xf32> -> vector<8x32xf32>
    %cst_17 = arith.constant dense<0.000000e+00> : vector<8x32xf32>
    %19 = tpu.matmul %1, %18, %cst_17 {dimension_numbers = #tpu.dot_dimension_numbers<[1], [0], [0], [1], [0, 0, 1, 1], [], []>} : vector<8x8xf32>, vector<8x32xf32>, vector<8x32xf32> -> vector<8x32xf32>
    %20 = vector.broadcast %7 : vector<1x32xf32> to vector<8x32xf32>
    %21 = arith.addf %19, %20 : vector<8x32xf32>
    %cst_18 = arith.constant 0.000000e+00 : f32
    %22 = vector.broadcast %cst_18 : f32 to vector<8x32xf32>
    %23 = arith.maximumf %21, %22 : vector<8x32xf32>
    %cst_19 = arith.constant dense<0.000000e+00> : vector<8x16xf32>
    %24 = tpu.matmul %23, %8, %cst_19 {dimension_numbers = #tpu.dot_dimension_numbers<[1], [0], [0], [1], [0, 0, 1, 1], [], []>} : vector<8x32xf32>, vector<32x16xf32>, vector<8x16xf32> -> vector<8x16xf32>
    %25 = vector.broadcast %9 : vector<1x16xf32> to vector<8x16xf32>
    %26 = arith.addf %24, %25 : vector<8x16xf32>
    %cst_20 = arith.constant 0.000000e+00 : f32
    %27 = vector.broadcast %cst_20 : f32 to vector<8x16xf32>
    %28 = arith.cmpf ogt, %26, %27 : vector<8x16xf32>
    %29 = math.exp %26 : vector<8x16xf32>
    %cst_21 = arith.constant 1.000000e+00 : f32
    %30 = vector.broadcast %cst_21 : f32 to vector<8x16xf32>
    %31 = arith.subf %29, %30 : vector<8x16xf32>
    %32 = arith.select %28, %26, %31 : vector<8x16xi1>, vector<8x16xf32>
    %cst_22 = arith.constant dense<0.000000e+00> : vector<8x32xf32>
    %33 = tpu.matmul %32, %10, %cst_22 {dimension_numbers = #tpu.dot_dimension_numbers<[1], [0], [0], [1], [0, 0, 1, 1], [], []>} : vector<8x16xf32>, vector<16x32xf32>, vector<8x32xf32> -> vector<8x32xf32>
    %34 = vector.broadcast %11 : vector<1x32xf32> to vector<8x32xf32>
    %35 = arith.addf %33, %34 : vector<8x32xf32>
    %36 = arith.mulf %35, %35 : vector<8x32xf32>
    %cst_23 = arith.constant dense<0.000000e+00> : vector<8xf32>
    %37 = vector.multi_reduction <add>, %36, %cst_23 [1] : vector<8x32xf32> to vector<8xf32>
    %38 = vector.shape_cast %37 : vector<8xf32> to vector<8x1xf32>
    %cst_24 = arith.constant 1.000000e-24 : f32
    %39 = vector.broadcast %cst_24 : f32 to vector<8x1xf32>
    %40 = arith.maximumf %38, %39 : vector<8x1xf32>
    %41 = math.rsqrt %40 : vector<8x1xf32>
    %42 = vector.broadcast %41 : vector<8x1xf32> to vector<8x32xf32>
    %43 = arith.mulf %35, %42 : vector<8x32xf32>
    %cst_25 = arith.constant dense<0.000000e+00> : vector<8x8xf32>
    %44 = tpu.matmul %43, %43, %cst_25 {dimension_numbers = #tpu.dot_dimension_numbers<[1], [1], [0], [0], [0, 0, 1, 0], [], []>} : vector<8x32xf32>, vector<8x32xf32>, vector<8x8xf32> -> vector<8x8xf32>
    %cst_26 = arith.constant 2.000000e+00 : f32
    %45 = vector.broadcast %cst_26 : f32 to vector<8x8xf32>
    %46 = arith.mulf %44, %45 : vector<8x8xf32>
    %47 = math.exp %46 : vector<8x8xf32>
    %c0_27 = arith.constant 0 : index
    %c0_28 = arith.constant 0 : index
    %c8 = arith.constant 8 : index
    %48 = vector.load %arg2[%c0_27, %c0_28, %c8] : memref<1x8x128xf32, #tpu.memory_space<vmem>>, vector<1x8x8xf32>
    %49 = vector.shape_cast %48 : vector<1x8x8xf32> to vector<8x8xf32>
    %50 = arith.mulf %47, %49 : vector<8x8xf32>
    %cst_29 = arith.constant dense<0.000000e+00> : vector<8xf32>
    %51 = vector.multi_reduction <add>, %50, %cst_29 [0] : vector<8x8xf32> to vector<8xf32>
    %52 = vector.shape_cast %51 : vector<8xf32> to vector<1x8xf32>
    %c0_30 = arith.constant 0 : index
    %c0_31 = arith.constant 0 : index
    %c16_32 = arith.constant 16 : index
    %53 = vector.load %arg2[%c0_30, %c0_31, %c16_32] : memref<1x8x128xf32, #tpu.memory_space<vmem>>, vector<1x8x8xf32>
    %54 = vector.shape_cast %53 : vector<1x8x8xf32> to vector<8x8xf32>
    %55 = arith.mulf %47, %54 : vector<8x8xf32>
    %cst_33 = arith.constant dense<0.000000e+00> : vector<8xf32>
    %56 = vector.multi_reduction <add>, %55, %cst_33 [0] : vector<8x8xf32> to vector<8xf32>
    %57 = vector.shape_cast %56 : vector<8xf32> to vector<1x8xf32>
    %cst_34 = arith.constant 0.000000e+00 : f32
    %58 = vector.broadcast %cst_34 : f32 to vector<1x8xf32>
    %59 = arith.cmpf one, %52, %58 : vector<1x8xf32>
    %cst_35 = arith.constant 0.000000e+00 : f32
    %60 = vector.broadcast %cst_35 : f32 to vector<1x8xf32>
    %61 = arith.cmpf one, %57, %60 : vector<1x8xf32>
    %62 = arith.andi %59, %61 : vector<1x8xi1>
    %63 = arith.addf %52, %57 : vector<1x8xf32>
    %cst_36 = arith.constant 1.000000e+00 : f32
    %64 = vector.broadcast %cst_36 : f32 to vector<1x8xf32>
    %65 = arith.select %62, %63, %64 : vector<1x8xi1>, vector<1x8xf32>
    %66 = tpu.reciprocal %65 : vector<1x8xf32> -> vector<1x8xf32>
    %67 = arith.mulf %52, %66 : vector<1x8xf32>
    %cst_37 = arith.constant 1.000000e+00 : f32
    %68 = vector.broadcast %cst_37 : f32 to vector<1x8xf32>
    %69 = arith.select %62, %67, %68 : vector<1x8xi1>, vector<1x8xf32>
    %cst_38 = arith.constant 8.000000e-01 : f32
    %70 = vector.broadcast %cst_38 : f32 to vector<1x8xf32>
    %71 = arith.cmpf olt, %69, %70 : vector<1x8xf32>
    %72 = arith.andi %62, %71 : vector<1x8xi1>
    %cst_39 = arith.constant 1.000000e+00 : f32
    %73 = vector.broadcast %cst_39 : f32 to vector<1x8xf32>
    %74 = arith.select %72, %69, %73 : vector<1x8xi1>, vector<1x8xf32>
    %75 = math.log %74 : vector<1x8xf32>
    %76 = vector.shape_cast %75 : vector<1x8xf32> to vector<1x1x8xf32>
    %cst_40 = arith.constant dense<0.000000e+00> : vector<1xf32>
    %77 = vector.multi_reduction <add>, %76, %cst_40 [1, 2] : vector<1x1x8xf32> to vector<1xf32>
    %78 = vector.shape_cast %77 : vector<1xf32> to vector<1x1x1xf32>
    %79 = vector.extract %78[0, 0, 0] : f32 from vector<1x1x1xf32>
    %cst_41 = arith.constant 0.000000e+00 : f32
    %80 = arith.subf %cst_41, %79 : f32
    %cst_42 = arith.constant 0.000000e+00 : f32
    %81 = arith.addf %cst_42, %80 : f32
    %82 = vector.broadcast %81 : f32 to vector<1x128xf32>
    %c0_43 = arith.constant 0 : index
    %c0_44 = arith.constant 0 : index
    %c0_45 = arith.constant 0 : index
    %83 = vector.load %arg3[%c0_43, %c0_44, %c0_45] : memref<1x1x128xf32, #tpu.memory_space<vmem>>, vector<1x1x128xf32>
    %84 = vector.shape_cast %83 : vector<1x1x128xf32> to vector<1x128xf32>
    %85 = vector.shape_cast %82 : vector<1x128xf32> to vector<1x1x128xf32>
    tpu.vector_store %arg3[%c0_43, %c0_44, %c0_45], %85 {strides = array<i32>} : memref<1x1x128xf32, #tpu.memory_space<vmem>>, vector<1x1x128xf32>,
    return
  }
  func.func @transform_0(%arg0: i32) -> (i32, i32) {
    %c0_i32 = arith.constant 0 : i32
    %c0_i32_0 = arith.constant 0 : i32
    %c0_i32_1 = arith.constant 0 : i32
    return %c0_i32, %c0_i32_0 : i32, i32
  }
  func.func @transform_1(%arg0: i32) -> (i32, i32, i32) {
    %c0_i32 = arith.constant 0 : i32
    %c0_i32_0 = arith.constant 0 : i32
    %c0_i32_1 = arith.constant 0 : i32
    return %arg0, %c0_i32, %c0_i32_0 : i32, i32, i32
  }
  func.func @transform_2(%arg0: i32) -> (i32, i32, i32) {
    %c0_i32 = arith.constant 0 : i32
    %c0_i32_0 = arith.constant 0 : i32
    %c0_i32_1 = arith.constant 0 : i32
    return %arg0, %c0_i32, %c0_i32_0 : i32, i32, i32
  }
}

</mosaic_0001>

<llo_original>
// kernel: tpu_custom_call.1
$region0: #{tpu_custom_call.1}
  #allocation0 [shape = 'u32[]', space=smem, size = 0x4, offset = 0x4, fixed_abs, tag = 'smem constant byte address 0x4 - core index']
  #allocation1 [shape = 'u32[144,128]{1,0:T(1,128)}', space=vmem, size = 0x12000, scoped, tag = 'internal scratch']
  %s0 = inlined_call_operand.hbm [shape: f32[160,128], index: 0, kind: input, shape index: {}]
  %s1 = inlined_call_operand.hbm [shape: f32[4,8,128], index: 1, kind: input, shape index: {}]
  %s2 = inlined_call_operand.hbm [shape: f32[4,1,128], index: 2, kind: output, shape index: {}]
  %s3 = sld [smem:[#allocation0]]
  $region49: #{tpu_custom_call.1} parent=0
    _
  %s5 = ssub.s32 1, %s3
  %s6 = scalar_select 0, %s5, %s3
  $region1: #{tpu_custom_call.1} parent=0
    #allocation2 [shape = 'u8[81920]{0}', space=vmem, size = 0x14000, scoped, tag = 'input window, operand 0, single buffered']
    #allocation3 [shape = 's32[2]{0}', space=sflag, size = 0x8, scoped, tag = 'scoped memory for tpu_custom_call.1']
    #allocation4 [shape = 's32[2]{0}', space=sflag, size = 0x8, scoped, tag = 'scoped memory for tpu_custom_call.1']
    #allocation5 [shape = 'u8[8192]{0}', space=vmem, size = 0x2000, scoped, tag = 'input window, operand 1']
    #allocation6 [shape = 's32[2]{0}', space=sflag, size = 0x8, scoped, tag = 'scoped memory for tpu_custom_call.1']
    #allocation7 [shape = 'u8[1024]{0}', space=vmem, size = 0x400, scoped, tag = 'output window, operand 0']
    %7 = vsyncpa [#allocation3], 0
    %8 = vsyncpa [#allocation6], 0
    %s9 = scalar_lea.sflag [#allocation6], 1
    %10 = vsyncpa %s9, 0
    %11 = vsyncpa [#allocation4], 0
    %s12 = scalar_lea.sflag [#allocation4], 1
    %13 = vsyncpa %s12, 0
    loop: start=0, step=1, limit=6
    $region2: #{tpu_custom_call.1} parent=1 // loop_pre_header
      _
    $region3: #{tpu_custom_call.1} parent=1 // loop_header
      %s15 = sphi 0, %s19
      %p16 = scmp.ge.s32.totalorder %s15, 6
      %s23 = sphi 0, %s23
      %s25 = sphi 0, %s23
      %s26 = sphi 0, %s25
      %s40 = sphi 0, %s26
      %s46 = sphi 0, %s48
      %s49 = sphi 0, %s46
      %s50 = sphi 0, %s49
      %s66 = sphi 0, %s50
      %s72 = sphi 0, %s74
      %s75 = sphi 0, %s72
      %s76 = sphi 0, %s75
      %s92 = sphi 0, %s76
    $region4: #{tpu_custom_call.1} parent=1 // loop_header_branch
      %18 = sbr.rel (%p16) target = $region8
    $region5: #{tpu_custom_call.1} parent=1 // loop_body
      %s20 = ssub.s32 %s15, 1
      %s21 = ssub.s32 %s15, 2
      %s22 = sadd.s32 %s15, 1
      %s24 = sadd.s32 %s23, 1
      %p27 = scmp.eq.s32.totalorder %s15, 3
      %p28 = scmp.ne.s32.totalorder %s23, %s25
      %p29 = scmp.eq.s32.totalorder %s15, 0
      %p30 = por %p28, %p29
      %p31 = scmp.ne.s32.totalorder %s23, %s25
      %p32 = scmp.eq.s32.totalorder %s20, 3
      %p33 = por %p31, %p32
      %p34 = scmp.ne.s32.totalorder %s25, %s26
      %p35 = scmp.eq.s32.totalorder %s20, 0
      %p36 = por %p34, %p35
      %p37 = scmp.ne.s32.totalorder %s25, %s26
      %p38 = scmp.eq.s32.totalorder %s21, 3
      %p39 = por %p37, %p38
      %p41 = scmp.ne.s32.totalorder %s26, %s40
      %p42 = scmp.eq.s32.totalorder %s21, 0
      %p43 = por %p41, %p42
      %s44 = ssub.s32 %s15, %s22
      %p45 = scmp.eq.s32.totalorder %s44, 0
      %s47 = sadd.s32 %s46, 1
      %s48 = scalar_select %p45, %s46, %s47
      %p51 = pneg %p45
      %p52 = scmp.eq.s32.totalorder %s15, 3
      %p53 = por %p51, %p52
      %p54 = scmp.ne.s32.totalorder %s46, %s49
      %p55 = scmp.eq.s32.totalorder %s15, 0
      %p56 = por %p54, %p55
      %p57 = scmp.ne.s32.totalorder %s46, %s49
      %p58 = scmp.eq.s32.totalorder %s20, 3
      %p59 = por %p57, %p58
      %p60 = scmp.ne.s32.totalorder %s49, %s50
      %p61 = scmp.eq.s32.totalorder %s20, 0
      %p62 = por %p60, %p61
      %p63 = scmp.ne.s32.totalorder %s49, %s50
      %p64 = scmp.eq.s32.totalorder %s21, 3
      %p65 = por %p63, %p64
      %p67 = scmp.ne.s32.totalorder %s50, %s66
      %p68 = scmp.eq.s32.totalorder %s21, 0
      %p69 = por %p67, %p68
      %s70 = ssub.s32 %s15, %s22
      %p71 = scmp.eq.s32.totalorder %s70, 0
      %s73 = sadd.s32 %s72, 1
      %s74 = scalar_select %p71, %s72, %s73
      %p77 = pneg %p71
      %p78 = scmp.eq.s32.totalorder %s15, 3
      %p79 = por %p77, %p78
      %p80 = scmp.ne.s32.totalorder %s72, %s75
      %p81 = scmp.eq.s32.totalorder %s15, 0
      %p82 = por %p80, %p81
      %p83 = scmp.ne.s32.totalorder %s72, %s75
      %p84 = scmp.eq.s32.totalorder %s20, 3
      %p85 = por %p83, %p84
      %p86 = scmp.ne.s32.totalorder %s75, %s76
      %p87 = scmp.eq.s32.totalorder %s20, 0
      %p88 = por %p86, %p87
      %p89 = scmp.ne.s32.totalorder %s75, %s76
      %p90 = scmp.eq.s32.totalorder %s21, 3
      %p91 = por %p89, %p90
      %p93 = scmp.ne.s32.totalorder %s76, %s92
      %p94 = scmp.eq.s32.totalorder %s21, 0
      %p95 = por %p93, %p94
      %p96 = scmp.le.s32.totalorder 1, %s15
      %p97 = scmp.lt.s32.totalorder %s15, 5
      %p98 = pnand %p96, %p97
      %p99 = pneg %p98
      // Predicated region
      $region9: #{tpu_custom_call.1} parent=5 // pred_check
        _
      $region10: #{tpu_custom_call.1} parent=5 // pred_check_branch
        %101 = sbr.rel (%p98) target = $region12
      $region11: #{tpu_custom_call.1} parent=5 // pred_region
        %s102 = ssub.s32 %s15, 1
        // Predicated region
        $region13: #{tpu_custom_call.1} parent=11 // pred_check
          %p103 = pneg %p36
        $region14: #{tpu_custom_call.1} parent=11 // pred_check_branch
          %105 = sbr.rel (%p103) target = $region16
        $region15: #{tpu_custom_call.1} parent=11 // pred_region
          %s107 = ssub.s32 2560, 2560
          %108 = vsyncadd [#allocation3], %s107
          %s109 = sshll.u32 [#allocation2], 4
          %s110 = int_to_ptr.vmem [resolvable:$true] %s109
          %115 = dma.hbm_to_vmem [thread:$0]  %s0, 2560, %s110, [#allocation3], 128, 128, 8
        $region16: #{tpu_custom_call.1} parent=11 // pred_fallthru
          _
      $region12: #{tpu_custom_call.1} parent=5 // pred_fallthru
        _
      %p116 = scmp.lt.s32.totalorder %s15, 4
      // Predicated region
      $region17: #{tpu_custom_call.1} parent=5 // pred_check
        %p117 = pneg %p116
      $region18: #{tpu_custom_call.1} parent=5 // pred_check_branch
        %119 = sbr.rel (%p117) target = $region20
      $region19: #{tpu_custom_call.1} parent=5 // pred_region
        // Predicated region
        $region21: #{tpu_custom_call.1} parent=19 // pred_check
          %p120 = pneg %p56
        $region22: #{tpu_custom_call.1} parent=19 // pred_check_branch
          %122 = sbr.rel (%p120) target = $region24
        $region23: #{tpu_custom_call.1} parent=19 // pred_region
          %s123 = sand.u32 %s46, 1
          %s124 = scalar_lea.sflag [#allocation6], %s123
          %s125 = sand.u32 %s46, 1
          %s126 = smul.addr %s125, 8
          %s127 = scalar_lea.vmem [#allocation5], %s126
          %s129 = ssub.s32 128, 128
          %130 = vsyncadd %s124, %s129
          %s131 = smul.addr %s15, 128
          %s132 = scalar_lea.hbm %s1, %s131
          %s134 = sshll.u32 %s127, 4
          %s135 = int_to_ptr.vmem [resolvable:$true] %s134
          %137 = dma.hbm_to_vmem [thread:$0]  %s132, 128, %s135, %s124
        $region24: #{tpu_custom_call.1} parent=19 // pred_fallthru
          _
      $region20: #{tpu_custom_call.1} parent=5 // pred_fallthru
        _
      %p138 = scmp.le.s32.totalorder 1, %s15
      %p139 = scmp.lt.s32.totalorder %s15, 5
      %p140 = pnand %p138, %p139
      %p141 = pneg %p140
      // Predicated region
      $region25: #{tpu_custom_call.1} parent=5 // pred_check
        _
      $region26: #{tpu_custom_call.1} parent=5 // pred_check_branch
        %143 = sbr.rel (%p140) target = $region28
      $region27: #{tpu_custom_call.1} parent=5 // pred_region
        %s144 = ssub.s32 %s15, 1
        // Predicated region
        $region29: #{tpu_custom_call.1} parent=27 // pred_check
          %p145 = pneg %p36
        $region30: #{tpu_custom_call.1} parent=27 // pred_check_branch
          %147 = sbr.rel (%p145) target = $region32
        $region31: #{tpu_custom_call.1} parent=27 // pred_region
          %148 = dma.done [#allocation3], 2560
        $region32: #{tpu_custom_call.1} parent=27 // pred_fallthru
          _
        %s149 = sand.u32 %s49, 1
        %s150 = scalar_lea.sflag [#allocation6], %s149
        %s151 = sand.u32 %s49, 1
        %s152 = smul.addr %s151, 8
        %s153 = scalar_lea.vmem [#allocation5], %s152
        // Predicated region
        $region33: #{tpu_custom_call.1} parent=27 // pred_check
          %p154 = pneg %p62
        $region34: #{tpu_custom_call.1} parent=27 // pred_check_branch
          %156 = sbr.rel (%p154) target = $region36
        $region35: #{tpu_custom_call.1} parent=27 // pred_region
          %157 = dma.done %s150, 128
        $region36: #{tpu_custom_call.1} parent=27 // pred_fallthru
          _
        %p158 = pneg %p36
        %p159 = pneg %p33
        %s160 = sand.u32 %s49, 1
        %s161 = scalar_lea.sflag [#allocation6], %s160
        %s162 = sand.u32 %s49, 1
        %s163 = smul.addr %s162, 8
        %s164 = scalar_lea.vmem [#allocation5], %s163
        %p165 = pneg %p62
        %p166 = pneg %p59
        %p167 = pneg %p88
        %p168 = pneg %p85
        %s169 = sand.u32 %s75, 1
        %s170 = scalar_lea.sflag [#allocation4], %s169
        %s171 = sand.u32 %s75, 1
        %s172 = scalar_lea.vmem [#allocation7], %s171
        %v173 = vld [vmem:[%s153] sm:$0xff]
        %v174 = vld [vmem:[#allocation2] sm:$0xff]
        %v175 = vld [vmem:[#allocation2 + $0x8] sm:$0xff]
        %v176 = vld [vmem:[#allocation2 + $0x10] sm:$0x1]
        %v177 = vld [vmem:[#allocation2 + $0x18] sm:$0xff]
        %v178 = vld [vmem:[#allocation2 + $0x20] sm:$0xff]
        %v179 = vld [vmem:[#allocation2 + $0x28] sm:$0xff]
        %v180 = vld [vmem:[#allocation2 + $0x30] sm:$0xff]
        %v181 = vld [vmem:[#allocation2 + $0x38] sm:$0xff]
        %v182 = vld [vmem:[#allocation2 + $0x40] sm:$0xff]
        %v183 = vld [vmem:[#allocation2 + $0x48] sm:$0xff]
        %v184 = vld [vmem:[#allocation2 + $0x50] sm:$0xff]
        %v185 = vld [vmem:[#allocation2 + $0x58] sm:$0x1]
        %v186 = vld [vmem:[#allocation2 + $0x60] sm:$0xff]
        %v187 = vld [vmem:[#allocation2 + $0x68] sm:$0xff]
        %v188 = vld [vmem:[#allocation2 + $0x70] sm:$0xff]
        %v189 = vld [vmem:[#allocation2 + $0x78] sm:$0xff]
        %v190 = vld [vmem:[#allocation2 + $0x80] sm:$0x1]
        %v191 = vld [vmem:[#allocation2 + $0x88] sm:$0xff]
        %v192 = vld [vmem:[#allocation2 + $0x90] sm:$0xff]
        %v193 = vld [vmem:[#allocation2 + $0x98] sm:$0x1]
        %195 = vrot.lane.b32.xlu0 %v173, 104
        %v196 = vpop.permute.xlu0 %195
        %vm197 = vcmask 130048
        %v198 = vsel %vm197, %v196, 0
        %200 = vmatprep.subr.mxu0 0.0
        %201 = vmatpush1.msra.mxu0 0.0
        %202 = vmatprep.subr.mxu0 0.0
        %203 = vmatpush1.msra.mxu0 0.0
        %204 = vmatprep.subr.mxu0 0.0
        %205 = vmatpush1.msra.mxu0 0.0
        %206 = vmatprep.subr.mxu0 0.0
        %207 = vmatpush1.msra.mxu0 0.0
        %208 = vmatprep.subr.mxu0 0.0
        %209 = vmatpush1.msra.mxu0 0.0
        %210 = vmatprep.subr.mxu0 0.0
        %211 = vmatpush1.msra.mxu0 0.0
        %212 = vmatprep.subr.mxu0 0.0
        %213 = vmatpush1.msra.mxu0 0.0
        %214 = vmatprep.subr.mxu0 0.0
        %215 = vmatpush1.msra.mxu0 0.0
        %216 = vmatprep.subr.mxu0 0.0
        %217 = vmatpush1.msra.mxu0 0.0
        %218 = vmatprep.subr.mxu0 0.0
        %219 = vmatpush1.msra.mxu0 0.0
        %220 = vmatprep.subr.mxu0 0.0
        %221 = vmatpush1.msra.mxu0 0.0
        %222 = vmatprep.subr.mxu0 0.0
        %223 = vmatpush1.msra.mxu0 0.0
        %224 = vmatprep.subr.mxu0 0.0
        %225 = vmatpush1.msra.mxu0 0.0
        %226 = vmatprep.subr.mxu0 0.0
        %227 = vmatpush1.msra.mxu0 0.0
        %228 = vmatprep.subr.mxu0 0.0
        %229 = vmatpush1.msra.mxu0 %v175
        %230 = vmatprep.subr.mxu0 0.0
        %231 = vmatpush1.msra.mxu0 %v174
        %232 = vmatprep.subr.mxu0 0.0
        %233 = vmatpush2.msra.mxu0 0.0
        %234 = vmatprep.subr.mxu0 0.0
        %235 = vmatpush2.msra.mxu0 0.0
        %236 = vmatprep.subr.mxu0 0.0
        %237 = vmatpush2.msra.mxu0 0.0
        %238 = vmatprep.subr.mxu0 0.0
        %239 = vmatpush2.msra.mxu0 0.0
        %240 = vmatprep.subr.mxu0 0.0
        %241 = vmatpush2.msra.mxu0 0.0
        %242 = vmatprep.subr.mxu0 0.0
        %243 = vmatpush2.msra.mxu0 0.0
        %244 = vmatprep.subr.mxu0 0.0
        %245 = vmatpush2.msra.mxu0 0.0
        %246 = vmatprep.subr.mxu0 0.0
        %247 = vmatpush2.msra.mxu0 0.0
        %248 = vmatprep.subr.mxu0 0.0
        %249 = vmatpush2.msra.mxu0 0.0
        %250 = vmatprep.subr.mxu0 0.0
        %251 = vmatpush2.msra.mxu0 0.0
        %252 = vmatprep.subr.mxu0 0.0
        %253 = vmatpush2.msra.mxu0 0.0
        %254 = vmatprep.subr.mxu0 0.0
        %255 = vmatpush2.msra.mxu0 0.0
        %256 = vmatprep.subr.mxu0 0.0
        %257 = vmatpush2.msra.mxu0 0.0
        %258 = vmatprep.subr.mxu0 0.0
        %259 = vmatpush2.msra.mxu0 0.0
        %260 = vmatprep.subr.mxu0 0.0
        %261 = vmatpush2.msra.mxu0 0.0
        %262 = vmatprep.subr.mxu0 0.0
        %263 = vmatpush2.msra.mxu0 0.0
        %264 = vmatprep.mubr.f32.mxu0 0.0
        %265 = vmatmul.mubr.f32.gmra.mxu0 %v198
        %v266 = vpop.f32.mrf.mxu0
        %v267 = vadd.f32 0.0, %v266
        %v268 = vpop.f32.mrf.mxu0
        %269 = vdwg.mxu0
        %v270 = vlaneseq
        %v271 = vshrl.u32 %v270, 7
        %v272 = vsub.s32 0, %v271
        %v273 = vrot.slane %v176, %v272
        %vm274 = vcmask 64512
        %v275 = vsel %vm274, %v173, 0
        %277 = vmatprep.subr.mxu0 0.0
        %278 = vmatpush1.msra.mxu0 0.0
        %279 = vmatprep.subr.mxu0 0.0
        %280 = vmatpush1.msra.mxu0 0.0
        %281 = vmatprep.subr.mxu0 0.0
        %282 = vmatpush1.msra.mxu0 0.0
        %283 = vmatprep.subr.mxu0 0.0
        %284 = vmatpush1.msra.mxu0 0.0
        %285 = vmatprep.subr.mxu0 0.0
        %286 = vmatpush1.msra.mxu0 0.0
        %287 = vmatprep.subr.mxu0 0.0
        %288 = vmatpush1.msra.mxu0 0.0
        %289 = vmatprep.subr.mxu0 0.0
        %290 = vmatpush1.msra.mxu0 0.0
        %291 = vmatprep.subr.mxu0 0.0
        %292 = vmatpush1.msra.mxu0 0.0
        %293 = vmatprep.subr.mxu0 0.0
        %294 = vmatpush1.msra.mxu0 0.0
        %295 = vmatprep.subr.mxu0 0.0
        %296 = vmatpush1.msra.mxu0 0.0
        %297 = vmatprep.subr.mxu0 0.0
        %298 = vmatpush1.msra.mxu0 0.0
        %299 = vmatprep.subr.mxu0 0.0
        %300 = vmatpush1.msra.mxu0 0.0
        %301 = vmatprep.subr.mxu0 0.0
        %302 = vmatpush1.msra.mxu0 0.0
        %303 = vmatprep.subr.mxu0 0.0
        %304 = vmatpush1.msra.mxu0 0.0
        %305 = vmatprep.subr.mxu0 0.0
        %306 = vmatpush1.msra.mxu0 0.0
        %307 = vmatprep.subr.mxu0 0.0
        %308 = vmatpush1.msra.mxu0 %v267
        %309 = vmatprep.subr.mxu0 0.0
        %310 = vmatpush2.msra.mxu0 0.0
        %311 = vmatprep.subr.mxu0 0.0
        %312 = vmatpush2.msra.mxu0 0.0
        %313 = vmatprep.subr.mxu0 0.0
        %314 = vmatpush2.msra.mxu0 0.0
        %315 = vmatprep.subr.mxu0 0.0
        %316 = vmatpush2.msra.mxu0 0.0
        %317 = vmatprep.subr.mxu0 0.0
        %318 = vmatpush2.msra.mxu0 0.0
        %319 = vmatprep.subr.mxu0 0.0
        %320 = vmatpush2.msra.mxu0 0.0
        %321 = vmatprep.subr.mxu0 0.0
        %322 = vmatpush2.msra.mxu0 0.0
        %323 = vmatprep.subr.mxu0 0.0
        %324 = vmatpush2.msra.mxu0 0.0
        %325 = vmatprep.subr.mxu0 0.0
        %326 = vmatpush2.msra.mxu0 0.0
        %327 = vmatprep.subr.mxu0 0.0
        %328 = vmatpush2.msra.mxu0 0.0
        %329 = vmatprep.subr.mxu0 0.0
        %330 = vmatpush2.msra.mxu0 0.0
        %331 = vmatprep.subr.mxu0 0.0
        %332 = vmatpush2.msra.mxu0 0.0
        %333 = vmatprep.subr.mxu0 0.0
        %334 = vmatpush2.msra.mxu0 0.0
        %335 = vmatprep.subr.mxu0 0.0
        %336 = vmatpush2.msra.mxu0 0.0
        %337 = vmatprep.subr.mxu0 0.0
        %338 = vmatpush2.msra.mxu0 0.0
        %339 = vmatprep.subr.mxu0 0.0
        %340 = vmatpush2.msra.mxu0 0.0
        %341 = vmatprep.mubr.f32.mxu0 0.0
        %342 = vmatmul.mubr.f32.gmra.mxu0 %v275
        %v343 = vpop.f32.mrf.mxu0
        %v344 = vadd.f32 %v273, %v343
        %v345 = vpop.f32.mrf.mxu0
        %346 = vdwg.mxu0
        %v347 = vmax.f32 %v344, 0.0
        %vm348 = vcmask 523264
        %v350 = vsel %vm348, %v347, 0
        %352 = vmatprep.subr.mxu0 0.0
        %353 = vmatpush1.msra.mxu0 0.0
        %354 = vmatprep.subr.mxu0 0.0
        %355 = vmatpush1.msra.mxu0 0.0
        %356 = vmatprep.subr.mxu0 0.0
        %357 = vmatpush1.msra.mxu0 0.0
        %358 = vmatprep.subr.mxu0 0.0
        %359 = vmatpush1.msra.mxu0 0.0
        %360 = vmatprep.subr.mxu0 0.0
        %361 = vmatpush1.msra.mxu0 0.0
        %362 = vmatprep.subr.mxu0 0.0
        %363 = vmatpush1.msra.mxu0 0.0
        %364 = vmatprep.subr.mxu0 0.0
        %365 = vmatpush1.msra.mxu0 0.0
        %366 = vmatprep.subr.mxu0 0.0
        %367 = vmatpush1.msra.mxu0 0.0
        %368 = vmatprep.subr.mxu0 0.0
        %369 = vmatpush1.msra.mxu0 %v184
        %370 = vmatprep.subr.mxu0 0.0
        %371 = vmatpush1.msra.mxu0 %v183
        %372 = vmatprep.subr.mxu0 0.0
        %373 = vmatpush1.msra.mxu0 %v182
        %374 = vmatprep.subr.mxu0 0.0
        %375 = vmatpush1.msra.mxu0 %v181
        %376 = vmatprep.subr.mxu0 0.0
        %377 = vmatpush1.msra.mxu0 %v180
        %378 = vmatprep.subr.mxu0 0.0
        %379 = vmatpush1.msra.mxu0 %v179
        %380 = vmatprep.subr.mxu0 0.0
        %381 = vmatpush1.msra.mxu0 %v178
        %382 = vmatprep.subr.mxu0 0.0
        %383 = vmatpush1.msra.mxu0 %v177
        %384 = vmatprep.subr.mxu0 0.0
        %385 = vmatpush2.msra.mxu0 0.0
        %386 = vmatprep.subr.mxu0 0.0
        %387 = vmatpush2.msra.mxu0 0.0
        %388 = vmatprep.subr.mxu0 0.0
        %389 = vmatpush2.msra.mxu0 0.0
        %390 = vmatprep.subr.mxu0 0.0
        %391 = vmatpush2.msra.mxu0 0.0
        %392 = vmatprep.subr.mxu0 0.0
        %393 = vmatpush2.msra.mxu0 0.0
        %394 = vmatprep.subr.mxu0 0.0
        %395 = vmatpush2.msra.mxu0 0.0
        %396 = vmatprep.subr.mxu0 0.0
        %397 = vmatpush2.msra.mxu0 0.0
        %398 = vmatprep.subr.mxu0 0.0
        %399 = vmatpush2.msra.mxu0 0.0
        %400 = vmatprep.subr.mxu0 0.0
        %401 = vmatpush2.msra.mxu0 0.0
        %402 = vmatprep.subr.mxu0 0.0
        %403 = vmatpush2.msra.mxu0 0.0
        %404 = vmatprep.subr.mxu0 0.0
        %405 = vmatpush2.msra.mxu0 0.0
        %406 = vmatprep.subr.mxu0 0.0
        %407 = vmatpush2.msra.mxu0 0.0
        %408 = vmatprep.subr.mxu0 0.0
        %409 = vmatpush2.msra.mxu0 0.0
        %410 = vmatprep.subr.mxu0 0.0
        %411 = vmatpush2.msra.mxu0 0.0
        %412 = vmatprep.subr.mxu0 0.0
        %413 = vmatpush2.msra.mxu0 0.0
        %414 = vmatprep.subr.mxu0 0.0
        %415 = vmatpush2.msra.mxu0 0.0
        %416 = vmatprep.mubr.f32.mxu0 0.0
        %417 = vmatmul.mubr.f32.gmra.mxu0 %v350
        %v418 = vpop.f32.mrf.mxu0
        %v419 = vadd.f32 0.0, %v418
        %v420 = vpop.f32.mrf.mxu0
        %421 = vdwg.mxu0
        %v422 = vlaneseq
        %v423 = vshrl.u32 %v422, 7
        %v424 = vsub.s32 0, %v423
        %v425 = vrot.slane %v185, %v424
        %426 = vmatprep.subr.mxu0 0.0
        %427 = vmatpush1.msra.mxu0 0.0
        %428 = vmatprep.subr.mxu0 0.0
        %429 = vmatpush1.msra.mxu0 0.0
        %430 = vmatprep.subr.mxu0 0.0
        %431 = vmatpush1.msra.mxu0 0.0
        %432 = vmatprep.subr.mxu0 0.0
        %433 = vmatpush1.msra.mxu0 0.0
        %434 = vmatprep.subr.mxu0 0.0
        %435 = vmatpush1.msra.mxu0 0.0
        %436 = vmatprep.subr.mxu0 0.0
        %437 = vmatpush1.msra.mxu0 0.0
        %438 = vmatprep.subr.mxu0 0.0
        %439 = vmatpush1.msra.mxu0 0.0
        %440 = vmatprep.subr.mxu0 0.0
        %441 = vmatpush1.msra.mxu0 0.0
        %442 = vmatprep.subr.mxu0 0.0
        %443 = vmatpush1.msra.mxu0 0.0
        %444 = vmatprep.subr.mxu0 0.0
        %445 = vmatpush1.msra.mxu0 0.0
        %446 = vmatprep.subr.mxu0 0.0
        %447 = vmatpush1.msra.mxu0 0.0
        %448 = vmatprep.subr.mxu0 0.0
        %449 = vmatpush1.msra.mxu0 0.0
        %450 = vmatprep.subr.mxu0 0.0
        %451 = vmatpush1.msra.mxu0 0.0
        %452 = vmatprep.subr.mxu0 0.0
        %453 = vmatpush1.msra.mxu0 0.0
        %454 = vmatprep.subr.mxu0 0.0
        %455 = vmatpush1.msra.mxu0 0.0
        %456 = vmatprep.subr.mxu0 0.0
        %457 = vmatpush1.msra.mxu0 %v419
        %458 = vmatprep.subr.mxu0 0.0
        %459 = vmatpush2.msra.mxu0 0.0
        %460 = vmatprep.subr.mxu0 0.0
        %461 = vmatpush2.msra.mxu0 0.0
        %462 = vmatprep.subr.mxu0 0.0
        %463 = vmatpush2.msra.mxu0 0.0
        %464 = vmatprep.subr.mxu0 0.0
        %465 = vmatpush2.msra.mxu0 0.0
        %466 = vmatprep.subr.mxu0 0.0
        %467 = vmatpush2.msra.mxu0 0.0
        %468 = vmatprep.subr.mxu0 0.0
        %469 = vmatpush2.msra.mxu0 0.0
        %470 = vmatprep.subr.mxu0 0.0
        %471 = vmatpush2.msra.mxu0 0.0
        %472 = vmatprep.subr.mxu0 0.0
        %473 = vmatpush2.msra.mxu0 0.0
        %474 = vmatprep.subr.mxu0 0.0
        %475 = vmatpush2.msra.mxu0 0.0
        %476 = vmatprep.subr.mxu0 0.0
        %477 = vmatpush2.msra.mxu0 0.0
        %478 = vmatprep.subr.mxu0 0.0
        %479 = vmatpush2.msra.mxu0 0.0
        %480 = vmatprep.subr.mxu0 0.0
        %481 = vmatpush2.msra.mxu0 0.0
        %482 = vmatprep.subr.mxu0 0.0
        %483 = vmatpush2.msra.mxu0 0.0
        %484 = vmatprep.subr.mxu0 0.0
        %485 = vmatpush2.msra.mxu0 0.0
        %486 = vmatprep.subr.mxu0 0.0
        %487 = vmatpush2.msra.mxu0 0.0
        %488 = vmatprep.subr.mxu0 0.0
        %489 = vmatpush2.msra.mxu0 0.0
        %490 = vmatprep.mubr.f32.mxu0 0.0
        %491 = vmatmul.mubr.f32.gmra.mxu0 %v275
        %v492 = vpop.f32.mrf.mxu0
        %v493 = vadd.f32 %v425, %v492
        %v494 = vpop.f32.mrf.mxu0
        %495 = vdwg.mxu0
        %v496 = vmax.f32 %v493, 0.0
        %v497 = vlaneseq
        %v498 = vshrl.u32 %v497, 7
        %v499 = vsub.s32 0, %v498
        %v500 = vrot.slane %v190, %v499
        %vm501 = vcmask 261120
        %v503 = vsel %vm501, %v496, 0
        %505 = vmatprep.subr.mxu0 0.0
        %506 = vmatpush1.msra.mxu0 0.0
        %507 = vmatprep.subr.mxu0 0.0
        %508 = vmatpush1.msra.mxu0 0.0
        %509 = vmatprep.subr.mxu0 0.0
        %510 = vmatpush1.msra.mxu0 0.0
        %511 = vmatprep.subr.mxu0 0.0
        %512 = vmatpush1.msra.mxu0 0.0
        %513 = vmatprep.subr.mxu0 0.0
        %514 = vmatpush1.msra.mxu0 0.0
        %515 = vmatprep.subr.mxu0 0.0
        %516 = vmatpush1.msra.mxu0 0.0
        %517 = vmatprep.subr.mxu0 0.0
        %518 = vmatpush1.msra.mxu0 0.0
        %519 = vmatprep.subr.mxu0 0.0
        %520 = vmatpush1.msra.mxu0 0.0
        %521 = vmatprep.subr.mxu0 0.0
        %522 = vmatpush1.msra.mxu0 0.0
        %523 = vmatprep.subr.mxu0 0.0
        %524 = vmatpush1.msra.mxu0 0.0
        %525 = vmatprep.subr.mxu0 0.0
        %526 = vmatpush1.msra.mxu0 0.0
        %527 = vmatprep.subr.mxu0 0.0
        %528 = vmatpush1.msra.mxu0 0.0
        %529 = vmatprep.subr.mxu0 0.0
        %530 = vmatpush1.msra.mxu0 %v189
        %531 = vmatprep.subr.mxu0 0.0
        %532 = vmatpush1.msra.mxu0 %v188
        %533 = vmatprep.subr.mxu0 0.0
        %534 = vmatpush1.msra.mxu0 %v187
        %535 = vmatprep.subr.mxu0 0.0
        %536 = vmatpush1.msra.mxu0 %v186
        %537 = vmatprep.subr.mxu0 0.0
        %538 = vmatpush2.msra.mxu0 0.0
        %539 = vmatprep.subr.mxu0 0.0
        %540 = vmatpush2.msra.mxu0 0.0
        %541 = vmatprep.subr.mxu0 0.0
        %542 = vmatpush2.msra.mxu0 0.0
        %543 = vmatprep.subr.mxu0 0.0
        %544 = vmatpush2.msra.mxu0 0.0
        %545 = vmatprep.subr.mxu0 0.0
        %546 = vmatpush2.msra.mxu0 0.0
        %547 = vmatprep.subr.mxu0 0.0
        %548 = vmatpush2.msra.mxu0 0.0
        %549 = vmatprep.subr.mxu0 0.0
        %550 = vmatpush2.msra.mxu0 0.0
        %551 = vmatprep.subr.mxu0 0.0
        %552 = vmatpush2.msra.mxu0 0.0
        %553 = vmatprep.subr.mxu0 0.0
        %554 = vmatpush2.msra.mxu0 0.0
        %555 = vmatprep.subr.mxu0 0.0
        %556 = vmatpush2.msra.mxu0 0.0
        %557 = vmatprep.subr.mxu0 0.0
        %558 = vmatpush2.msra.mxu0 0.0
        %559 = vmatprep.subr.mxu0 0.0
        %560 = vmatpush2.msra.mxu0 0.0
        %561 = vmatprep.subr.mxu0 0.0
        %562 = vmatpush2.msra.mxu0 0.0
        %563 = vmatprep.subr.mxu0 0.0
        %564 = vmatpush2.msra.mxu0 0.0
        %565 = vmatprep.subr.mxu0 0.0
        %566 = vmatpush2.msra.mxu0 0.0
        %567 = vmatprep.subr.mxu0 0.0
        %568 = vmatpush2.msra.mxu0 0.0
        %569 = vmatprep.mubr.f32.mxu0 0.0
        %570 = vmatmul.mubr.f32.gmra.mxu0 %v503
        %v571 = vpop.f32.mrf.mxu0
        %v572 = vadd.f32 %v500, %v571
        %v573 = vpop.f32.mrf.mxu0
        %574 = vdwg.mxu0
        %vm575 = vcmp.gt.f32.partialorder %v572, 0.0
        %v576 = vmul.f32 %v572, 1.442695
        %v577 = vpow.pop %v576
        %v578 = vsub.f32 %v577, 1.0
        %v579 = vsel %vm575, %v572, %v578
        %v580 = vlaneseq
        %v581 = vshrl.u32 %v580, 7
        %v582 = vsub.s32 0, %v581
        %v583 = vrot.slane %v193, %v582
        %v585 = vsel %vm197, %v579, 0
        %587 = vmatprep.subr.mxu0 0.0
        %588 = vmatpush1.msra.mxu0 0.0
        %589 = vmatprep.subr.mxu0 0.0
        %590 = vmatpush1.msra.mxu0 0.0
        %591 = vmatprep.subr.mxu0 0.0
        %592 = vmatpush1.msra.mxu0 0.0
        %593 = vmatprep.subr.mxu0 0.0
        %594 = vmatpush1.msra.mxu0 0.0
        %595 = vmatprep.subr.mxu0 0.0
        %596 = vmatpush1.msra.mxu0 0.0
        %597 = vmatprep.subr.mxu0 0.0
        %598 = vmatpush1.msra.mxu0 0.0
        %599 = vmatprep.subr.mxu0 0.0
        %600 = vmatpush1.msra.mxu0 0.0
        %601 = vmatprep.subr.mxu0 0.0
        %602 = vmatpush1.msra.mxu0 0.0
        %603 = vmatprep.subr.mxu0 0.0
        %604 = vmatpush1.msra.mxu0 0.0
        %605 = vmatprep.subr.mxu0 0.0
        %606 = vmatpush1.msra.mxu0 0.0
        %607 = vmatprep.subr.mxu0 0.0
        %608 = vmatpush1.msra.mxu0 0.0
        %609 = vmatprep.subr.mxu0 0.0
        %610 = vmatpush1.msra.mxu0 0.0
        %611 = vmatprep.subr.mxu0 0.0
        %612 = vmatpush1.msra.mxu0 0.0
        %613 = vmatprep.subr.mxu0 0.0
        %614 = vmatpush1.msra.mxu0 0.0
        %615 = vmatprep.subr.mxu0 0.0
        %616 = vmatpush1.msra.mxu0 %v192
        %617 = vmatprep.subr.mxu0 0.0
        %618 = vmatpush1.msra.mxu0 %v191
        %619 = vmatprep.subr.mxu0 0.0
        %620 = vmatpush2.msra.mxu0 0.0
        %621 = vmatprep.subr.mxu0 0.0
        %622 = vmatpush2.msra.mxu0 0.0
        %623 = vmatprep.subr.mxu0 0.0
        %624 = vmatpush2.msra.mxu0 0.0
        %625 = vmatprep.subr.mxu0 0.0
        %626 = vmatpush2.msra.mxu0 0.0
        %627 = vmatprep.subr.mxu0 0.0
        %628 = vmatpush2.msra.mxu0 0.0
        %629 = vmatprep.subr.mxu0 0.0
        %630 = vmatpush2.msra.mxu0 0.0
        %631 = vmatprep.subr.mxu0 0.0
        %632 = vmatpush2.msra.mxu0 0.0
        %633 = vmatprep.subr.mxu0 0.0
        %634 = vmatpush2.msra.mxu0 0.0
        %635 = vmatprep.subr.mxu0 0.0
        %636 = vmatpush2.msra.mxu0 0.0
        %637 = vmatprep.subr.mxu0 0.0
        %638 = vmatpush2.msra.mxu0 0.0
        %639 = vmatprep.subr.mxu0 0.0
        %640 = vmatpush2.msra.mxu0 0.0
        %641 = vmatprep.subr.mxu0 0.0
        %642 = vmatpush2.msra.mxu0 0.0
        %643 = vmatprep.subr.mxu0 0.0
        %644 = vmatpush2.msra.mxu0 0.0
        %645 = vmatprep.subr.mxu0 0.0
        %646 = vmatpush2.msra.mxu0 0.0
        %647 = vmatprep.subr.mxu0 0.0
        %648 = vmatpush2.msra.mxu0 0.0
        %649 = vmatprep.subr.mxu0 0.0
        %650 = vmatpush2.msra.mxu0 0.0
        %651 = vmatprep.mubr.f32.mxu0 0.0
        %652 = vmatmul.mubr.f32.gmra.mxu0 %v585
        %v653 = vpop.f32.mrf.mxu0
        %v654 = vadd.f32 %v583, %v653
        %v655 = vpop.f32.mrf.mxu0
        %656 = vdwg.mxu0
        %v657 = vmul.f32 %v654, %v654
        %v658 = vsel %vm501, %v657, 0.0
        %659 = vadd.xlane.f32.xlu0 %v658
        %v660 = vpop.xlane.xlu0 %659
        %v661 = vmax.f32 %v660, 1e-24
        %v662 = vrsqrt.pop %v661
        %v663 = vmul.f32 %v654, %v662
        %v665 = vsel %vm501, %v663, 0
        %667 = vmatprep.subr.mxu0 0.0
        %668 = vmatpush1.xpose.msra.mxu0 0.0
        %669 = vmatprep.subr.mxu0 0.0
        %670 = vmatpush1.xpose.msra.mxu0 0.0
        %671 = vmatprep.subr.mxu0 0.0
        %672 = vmatpush1.xpose.msra.mxu0 0.0
        %673 = vmatprep.subr.mxu0 0.0
        %674 = vmatpush1.xpose.msra.mxu0 0.0
        %675 = vmatprep.subr.mxu0 0.0
        %676 = vmatpush1.xpose.msra.mxu0 0.0
        %677 = vmatprep.subr.mxu0 0.0
        %678 = vmatpush1.xpose.msra.mxu0 0.0
        %679 = vmatprep.subr.mxu0 0.0
        %680 = vmatpush1.xpose.msra.mxu0 0.0
        %681 = vmatprep.subr.mxu0 0.0
        %682 = vmatpush1.xpose.msra.mxu0 0.0
        %683 = vmatprep.subr.mxu0 0.0
        %684 = vmatpush1.xpose.msra.mxu0 0.0
        %685 = vmatprep.subr.mxu0 0.0
        %686 = vmatpush1.xpose.msra.mxu0 0.0
        %687 = vmatprep.subr.mxu0 0.0
        %688 = vmatpush1.xpose.msra.mxu0 0.0
        %689 = vmatprep.subr.mxu0 0.0
        %690 = vmatpush1.xpose.msra.mxu0 0.0
        %691 = vmatprep.subr.mxu0 0.0
        %692 = vmatpush1.xpose.msra.mxu0 0.0
        %693 = vmatprep.subr.mxu0 0.0
        %694 = vmatpush1.xpose.msra.mxu0 0.0
        %695 = vmatprep.subr.mxu0 0.0
        %696 = vmatpush1.xpose.msra.mxu0 0.0
        %697 = vmatprep.subr.mxu0 0.0
        %698 = vmatpush1.xpose.msra.mxu0 %v665
        %699 = vmatprep.subr.mxu0 0.0
        %700 = vmatpush2.xpose.msra.mxu0 0.0
        %701 = vmatprep.subr.mxu0 0.0
        %702 = vmatpush2.xpose.msra.mxu0 0.0
        %703 = vmatprep.subr.mxu0 0.0
        %704 = vmatpush2.xpose.msra.mxu0 0.0
        %705 = vmatprep.subr.mxu0 0.0
        %706 = vmatpush2.xpose.msra.mxu0 0.0
        %707 = vmatprep.subr.mxu0 0.0
        %708 = vmatpush2.xpose.msra.mxu0 0.0
        %709 = vmatprep.subr.mxu0 0.0
        %710 = vmatpush2.xpose.msra.mxu0 0.0
        %711 = vmatprep.subr.mxu0 0.0
        %712 = vmatpush2.xpose.msra.mxu0 0.0
        %713 = vmatprep.subr.mxu0 0.0
        %714 = vmatpush2.xpose.msra.mxu0 0.0
        %715 = vmatprep.subr.mxu0 0.0
        %716 = vmatpush2.xpose.msra.mxu0 0.0
        %717 = vmatprep.subr.mxu0 0.0
        %718 = vmatpush2.xpose.msra.mxu0 0.0
        %719 = vmatprep.subr.mxu0 0.0
        %720 = vmatpush2.xpose.msra.mxu0 0.0
        %721 = vmatprep.subr.mxu0 0.0
        %722 = vmatpush2.xpose.msra.mxu0 0.0
        %723 = vmatprep.subr.mxu0 0.0
        %724 = vmatpush2.xpose.msra.mxu0 0.0
        %725 = vmatprep.subr.mxu0 0.0
        %726 = vmatpush2.xpose.msra.mxu0 0.0
        %727 = vmatprep.subr.mxu0 0.0
        %728 = vmatpush2.xpose.msra.mxu0 0.0
        %729 = vmatprep.subr.mxu0 0.0
        %730 = vmatpush2.xpose.msra.mxu0 0.0
        %731 = vmatprep.mubr.f32.mxu0 0.0
        %732 = vmatmul.mubr.f32.gmra.mxu0 %v665
        %v733 = vpop.f32.mrf.mxu0
        %v734 = vadd.f32 0.0, %v733
        %v735 = vpop.f32.mrf.mxu0
        %736 = vdwg.mxu0
        %v737 = vmul.f32 %v734, 2.0
        %v738 = vmul.f32 %v737, 1.442695
        %v739 = vpow.pop %v738
        %740 = vrot.lane.b32.xlu0 %v173, 120
        %v741 = vpop.permute.xlu0 %740
        %v743 = vmul.f32 %v739, %v741
        %v744 = vsel %vm274, %v743, 0.0
        %v745 = vrot.slane %v744, 4
        %v746 = vadd.f32 %v744, %v745
        %v747 = vrot.slane %v746, 2
        %v748 = vadd.f32 %v746, %v747
        %v749 = vrot.slane %v748, 1
        %v750 = vadd.f32 %v748, %v749
        %751 = vrot.lane.b32.xlu0 %v173, 112
        %v752 = vpop.permute.xlu0 %751
        %v754 = vmul.f32 %v739, %v752
        %v755 = vsel %vm274, %v754, 0.0
        %v756 = vrot.slane %v755, 4
        %v757 = vadd.f32 %v755, %v756
        %v758 = vrot.slane %v757, 2
        %v759 = vadd.f32 %v757, %v758
        %v760 = vrot.slane %v759, 1
        %v761 = vadd.f32 %v759, %v760
        %vm762 = vcmp.ne.f32.partialorder %v750, 0.0
        %vm763 = vcmp.ne.f32.partialorder %v761, 0.0
        %vm764 = vmand %vm762, %vm763
        %v765 = vadd.f32 %v750, %v761
        %v766 = vsel %vm764, %v765, 1.0
        %v767 = vrcp.pop %v766
        %v768 = vmul.f32 %v750, %v767
        %v769 = vsel %vm764, %v768, 1.0
        %vm770 = vcmp.lt.f32.partialorder %v769, 0.8
        %vm771 = vmand %vm764, %vm770
        %v772 = vsel %vm771, %v769, 1.0
        %v773 = vlog2.pop %v772
        %v774 = vmul.f32 %v773, 0.6931472
        %vm775 = vcmask 57344
        %v776 = vsel %vm775, %v774, 0.0
        %777 = vadd.xlane.f32.xlu0 %v776
        %v778 = vpop.xlane.xlu0 %777
        %v779 = vrot.slane %v778, 4
        %v780 = vadd.f32 %v778, %v779
        %v781 = vrot.slane %v780, 2
        %v782 = vadd.f32 %v780, %v781
        %v783 = vrot.slane %v782, 1
        %v784 = vadd.f32 %v782, %v783
        %s785 = vtos %v784
        %s786 = ssub.f32 0.0, %s785
        %s787 = sadd.f32 %s786, 0.0
        %v788 = vstv %s787
        %789 = vst [vmem:[%s172] sm:$0x1] %v788
        %s790 = sand.u32 %s75, 1
        %s791 = scalar_lea.sflag [#allocation4], %s790
        %s792 = sand.u32 %s75, 1
        %s793 = scalar_lea.vmem [#allocation7], %s792
        // Predicated region
        $region37: #{tpu_custom_call.1} parent=27 // pred_check
          %p794 = pneg %p85
        $region38: #{tpu_custom_call.1} parent=27 // pred_check_branch
          %796 = sbr.rel (%p794) target = $region40
        $region39: #{tpu_custom_call.1} parent=27 // pred_region
          %s798 = ssub.s32 16, 16
          %799 = vsyncadd %s791, %s798
          %s800 = smul.addr %s20, 16
          %s801 = scalar_lea.hbm %s2, %s800
          %s803 = sshll.u32 %s793, 4
          %s804 = int_to_ptr.vmem [resolvable:$true] %s803
          %806 = dma.vmem_to_hbm [thread:$0]  %s804, 16, %s801, %s791
        $region40: #{tpu_custom_call.1} parent=27 // pred_fallthru
          _
      $region28: #{tpu_custom_call.1} parent=5 // pred_fallthru
        _
      %p807 = scmp.le.s32.totalorder 2, %s15
      // Predicated region
      $region41: #{tpu_custom_call.1} parent=5 // pred_check
        %p808 = pneg %p807
      $region42: #{tpu_custom_call.1} parent=5 // pred_check_branch
        %810 = sbr.rel (%p808) target = $region44
      $region43: #{tpu_custom_call.1} parent=5 // pred_region
        %s811 = ssub.s32 %s15, 2
        // Predicated region
        $region45: #{tpu_custom_call.1} parent=43 // pred_check
          %p812 = pneg %p91
        $region46: #{tpu_custom_call.1} parent=43 // pred_check_branch
          %814 = sbr.rel (%p812) target = $region48
        $region47: #{tpu_custom_call.1} parent=43 // pred_region
          %s815 = sand.u32 %s76, 1
          %s816 = scalar_lea.sflag [#allocation4], %s815
          %s817 = sand.u32 %s76, 1
          %s818 = scalar_lea.vmem [#allocation7], %s817
          %819 = dma.done %s816, 16
        $region48: #{tpu_custom_call.1} parent=43 // pred_fallthru
          _
      $region44: #{tpu_custom_call.1} parent=5 // pred_fallthru
        _
    $region6: #{tpu_custom_call.1} parent=1 // loop_footer
      %s19 = sadd.s32 1, %s15
    $region7: #{tpu_custom_call.1} parent=1 // loop_footer_branch
      %14 = sbr.rel target = $region3
    $region8: #{tpu_custom_call.1} parent=1 // loop_exit
      _
    %820 = vsyncpa [#allocation3], 1
    %s821 = scalar_lea.sflag [#allocation3], 1
    %822 = vsyncpa %s821, 1
    %823 = vsyncpa [#allocation6], 1
    %s824 = scalar_lea.sflag [#allocation6], 1
    %825 = vsyncpa %s824, 1
    %826 = vsyncpa [#allocation4], 1
    %s827 = scalar_lea.sflag [#allocation4], 1
    %828 = vsyncpa %s827, 1

</llo_original>
